<compile_context>
chip_gen: v5e
topology: v5e:2x2
jax: 0.10.0
libtpu: 0.0.40
codegen_flags: <defaults>
</compile_context>

<pallas_src>
import functools

import jax
import jax.numpy as jnp
from jax.experimental import pallas as pl
from jax.experimental.pallas import tpu as pltpu

F1 = 16   # conv1 output features
F2 = 32   # conv2 output features


def _round_up(x, m):
    return ((x + m - 1) // m) * m


# -----------------------------------------------------------------------------
# Fused Pallas kernel
# -----------------------------------------------------------------------------
def _fused_gcn_kernel(a_ref, p_ref, x_ref, w1_ref, b1_ref, w2_ref, b2_ref,
                      wfc_ref, bfc_ref, o_ref,
                      xw1_ref, xw2_ref, h1_ref, pooled_ref):
    phase = pl.program_id(0)
    i = pl.program_id(1)
    nt = pl.num_programs(1)
    tm = a_ref.shape[0]
    row0 = pl.multiple_of(i * tm, 8)

    # ---------------- phase 0: first GCN layer ----------------
    @pl.when(phase == 0)
    def _():
        @pl.when(i == 0)
        def _():
            # XW1 = X @ W1 : computed once, stays resident in VMEM (bf16 for MXU feed)
            xw1_ref[...] = jnp.dot(
                x_ref[...], w1_ref[...],
                preferred_element_type=jnp.float32).astype(jnp.bfloat16)

        h1 = jnp.dot(a_ref[...], xw1_ref[...],
                     preferred_element_type=jnp.float32)
        h1_ref[pl.ds(row0, tm), :] = jnp.maximum(h1 + b1_ref[...], 0.0)

    # -------- phase 1: second GCN layer + fused mean pool + FC --------
    @pl.when(phase == 1)
    def _():
        @pl.when(i == 0)
        def _():
            # XW2 = H1 @ W2 : computed once from the VMEM-resident H1
            xw2_ref[...] = jnp.dot(
                h1_ref[...], w2_ref[...],
                preferred_element_type=jnp.float32).astype(jnp.bfloat16)
            pooled_ref[...] = jnp.zeros_like(pooled_ref)

        h2 = jnp.dot(a_ref[...], xw2_ref[...],
                     preferred_element_type=jnp.float32)
        h2 = jnp.maximum(h2 + b2_ref[...], 0.0)

        # mean-pool contribution of this row tile: P[:, rows] @ H2[rows, :]
        pooled_ref[...] += jnp.dot(p_ref[...], h2,
                                   preferred_element_type=jnp.float32)

        @pl.when(i == nt - 1)
        def _():
            o_ref[...] = (jnp.dot(pooled_ref[...], wfc_ref[...],
                                  preferred_element_type=jnp.float32)
                          + bfc_ref[...]).astype(o_ref.dtype)


def _full_spec(shape):
    n = len(shape)
    return pl.BlockSpec(shape, lambda p, i, _n=n: (0,) * _n)


def _fused_forward_pallas(a_hat_bf16, p_mat, x_pad, w1, b1, w2, b2, w_fc, b_fc, *, tm):
    n_pad = a_hat_bf16.shape[0]
    g_pad = p_mat.shape[0]
    f_in = x_pad.shape[1]
    c = w_fc.shape[1]
    nt = n_pad // tm

    in_specs = [
        pl.BlockSpec((tm, n_pad), lambda p, i: (i, 0)),   # A_hat row tile (streamed)
        pl.BlockSpec((g_pad, tm), lambda p, i: (0, i)),   # P column tile
        _full_spec((n_pad, f_in)),                        # X (resident)
        _full_spec(w1.shape), _full_spec(b1.shape),
        _full_spec(w2.shape), _full_spec(b2.shape),
        _full_spec(w_fc.shape), _full_spec(b_fc.shape),
    ]
    out_specs = pl.BlockSpec((g_pad, c), lambda p, i: (0, 0))

    scratch_shapes = [
        pltpu.VMEM((n_pad, F1), jnp.bfloat16),   # XW1
        pltpu.VMEM((n_pad, F2), jnp.bfloat16),   # XW2 = H1 @ W2
        pltpu.VMEM((n_pad, F1), jnp.float32),    # H1
        pltpu.VMEM((g_pad, F2), jnp.float32),    # pooled accumulator
    ]

    # advisory cost estimate for XLA scheduling of surrounding glue
    flops = (2 * n_pad * n_pad * (F1 + F2)
             + 2 * n_pad * (f_in * F1 + F1 * F2)
             + 2 * n_pad * g_pad * F2
             + 2 * g_pad * F2 * c)
    bytes_accessed = (2 * n_pad * n_pad * 2          # A_hat (bf16) read in both phases
                      + 2 * g_pad * n_pad * 4        # P tiles
                      + n_pad * f_in * 4 + g_pad * c * 4)
    cost = pl.CostEstimate(flops=flops, transcendentals=0,
                           bytes_accessed=bytes_accessed)

    # VMEM budget: double-buffered A/P tiles + resident X + scratch (+ headroom),
    # capped at 48 MiB so it also fits v7x's 64 MiB/TC.
    vmem_need = (2 * (tm * n_pad * 2 + g_pad * tm * 4)
                 + n_pad * f_in * 4
                 + n_pad * (F1 * 2 + F2 * 2 + F1 * 4)
                 + g_pad * F2 * 4)
    vmem_limit = int(min(48 << 20, max(16 << 20, 2 * vmem_need)))

    return pl.pallas_call(
        _fused_gcn_kernel,
        out_shape=jax.ShapeDtypeStruct((g_pad, c), jnp.float32),
        grid=(2, nt),
        in_specs=in_specs,
        out_specs=out_specs,
        scratch_shapes=scratch_shapes,
        compiler_params=pltpu.CompilerParams(
            # phase axis and row axis are both sequential: layer 2 depends on the
            # full H1 from layer 1 and the pool accumulates across row tiles.
            dimension_semantics=("arbitrary", "arbitrary"),
            vmem_limit_bytes=vmem_limit),
        cost_estimate=cost,
    )(a_hat_bf16, p_mat, x_pad, w1, b1, w2, b2, w_fc, b_fc)


# -----------------------------------------------------------------------------
# Glue (plain JAX): graph preprocessing + params + forward wrapper
# -----------------------------------------------------------------------------
def build_normalized_adjacency(edge_index, num_nodes, n_pad):
    """A_hat = D^-1/2 (A + I) D^-1/2, dense, zero-padded to n_pad, cast to bf16."""
    src, dst = edge_index[0], edge_index[1]
    a = jnp.zeros((num_nodes, num_nodes), jnp.float32)
    a = a.at[dst, src].add(1.0)                       # message src -> dst
    a = a + jnp.eye(num_nodes, dtype=jnp.float32)     # self loops
    deg = jnp.sum(a, axis=1)
    dinv = jnp.where(deg > 0, 1.0 / jnp.sqrt(deg), 0.0)
    a_hat = a * dinv[:, None] * dinv[None, :]
    pad = n_pad - num_nodes
    a_hat = jnp.pad(a_hat, ((0, pad), (0, pad)))
    return a_hat.astype(jnp.bfloat16)


def build_pool_matrix(batch, num_graphs, n_pad, g_pad):
    """P[g, n] = 1/|graph g| if batch[n]==g else 0 (global_mean_pool), zero-padded."""
    num_nodes = batch.shape[0]
    onehot = (batch[None, :] == jnp.arange(num_graphs)[:, None]).astype(jnp.float32)
    counts = jnp.sum(onehot, axis=1, keepdims=True)
    p = onehot / jnp.maximum(counts, 1.0)
    return jnp.pad(p, ((0, g_pad - num_graphs), (0, n_pad - num_nodes)))


def init_params(num_features, num_classes, seed=0):
    key = jax.random.PRNGKey(seed)
    k = jax.random.split(key, 4)

    def glorot(kk, fan_in, fan_out):
        lim = jnp.sqrt(6.0 / (fan_in + fan_out))
        return jax.random.uniform(kk, (fan_in, fan_out), jnp.float32, -lim, lim)

    return {
        "w1": glorot(k[0], num_features, F1),
        "b1": jnp.zeros((F1,), jnp.float32),
        "w2": glorot(k[1], F1, F2),
        "b2": jnp.zeros((F2,), jnp.float32),
        "w_fc": glorot(k[2], F2, num_classes),
        "b_fc": jax.random.uniform(k[3], (num_classes,), jnp.float32, -0.1, 0.1),
    }


@functools.partial(jax.jit, static_argnames=("num_graphs",))
def graph_conv_model_forward(params, x, edge_index, batch, num_graphs):
    n = x.shape[0]
    n_pad8 = _round_up(n, 8)
    tm = min(256, n_pad8)            # row tile: either the (8-padded) full N, or 256
    n_pad = _round_up(n, tm)         # guarantees tm | n_pad and lane/sublane legality
    g_pad = _round_up(max(num_graphs, 1), 8)

    a_hat = build_normalized_adjacency(edge_index, n, n_pad)
    p_mat = build_pool_matrix(batch, num_graphs, n_pad, g_pad)
    x_pad = jnp.pad(x.astype(jnp.float32), ((0, n_pad - n), (0, 0)))

    out = _fused_forward_pallas(
        a_hat, p_mat, x_pad,
        params["w1"], params["b1"].reshape(1, -1),
        params["w2"], params["b2"].reshape(1, -1),
        params["w_fc"], params["b_fc"].reshape(1, -1),
        tm=tm)
    return out[:num_graphs]


# -----------------------------------------------------------------------------
if __name__ == "__main__":
    num_nodes = 16
    num_features = 8
    num_classes = 4
    num_graphs = 2

    key = jax.random.PRNGKey(0)
    kx, _ = jax.random.split(key)

    x = jax.random.normal(kx, (num_nodes, num_features), jnp.float32)

    # deterministic small ring graph (both edge directions present)
    src = jnp.arange(num_nodes, dtype=jnp.int32)
    dst = (src + 1) % num_nodes
    edge_index = jnp.concatenate(
        [jnp.stack([src, dst], axis=0), jnp.stack([dst, src], axis=0)], axis=1
    )  # [2, 2*num_nodes]

    # first half of nodes -> graph 0, second half -> graph 1
    batch = jnp.concatenate(
        [jnp.zeros((num_nodes // 2,), jnp.int32), jnp.ones((num_nodes // 2,), jnp.int32)]
    )

    params = init_params(num_features, num_classes, seed=0)

    out = graph_conv_model_forward(params, x, edge_index, batch, num_graphs)
    out = jax.block_until_ready(out)
    assert out.shape == (num_graphs, num_classes)
    assert jnp.all(jnp.isfinite(out))
    print("KERNEL_OK")
</pallas_src>

<mosaic_0001>
module attributes {stable_mosaic.version = 11 : i64} {
  func.func @_fused_gcn_kernel(%arg0: i32, %arg1: i32, %arg2: memref<16x16xbf16, #tpu.memory_space<vmem>>, %arg3: memref<8x16xf32, #tpu.memory_space<vmem>>, %arg4: memref<16x8xf32, #tpu.memory_space<vmem>>, %arg5: memref<8x16xf32, #tpu.memory_space<vmem>>, %arg6: memref<1x16xf32, #tpu.memory_space<vmem>>, %arg7: memref<16x32xf32, #tpu.memory_space<vmem>>, %arg8: memref<1x32xf32, #tpu.memory_space<vmem>>, %arg9: memref<32x4xf32, #tpu.memory_space<vmem>>, %arg10: memref<1x4xf32, #tpu.memory_space<vmem>>, %arg11: memref<8x4xf32, #tpu.memory_space<vmem>>, %arg12: memref<16x16xbf16, #tpu.memory_space<vmem>>, %arg13: memref<16x32xbf16, #tpu.memory_space<vmem>>, %arg14: memref<16x16xf32, #tpu.memory_space<vmem>>, %arg15: memref<8x32xf32, #tpu.memory_space<vmem>>) attributes {dimension_semantics = [#tpu.dimension_semantics<arbitrary>, #tpu.dimension_semantics<arbitrary>], iteration_bounds = array<i64: 2, 1>, scalar_prefetch = 0 : i64, scratch_operands = 4 : i64, tpu.core_type = #tpu.core_type<tc>, window_params = [{transform_indices = @transform_0, window_bounds = array<i64: 16, 16>}, {transform_indices = @transform_1, window_bounds = array<i64: 8, 16>}, {pipeline_mode = #tpu.pipeline_mode<synchronous>, transform_indices = @transform_2, window_bounds = array<i64: 16, 8>}, {pipeline_mode = #tpu.pipeline_mode<synchronous>, transform_indices = @transform_3, window_bounds = array<i64: 8, 16>}, {pipeline_mode = #tpu.pipeline_mode<synchronous>, transform_indices = @transform_4, window_bounds = array<i64: 1, 16>}, {pipeline_mode = #tpu.pipeline_mode<synchronous>, transform_indices = @transform_5, window_bounds = array<i64: 16, 32>}, {pipeline_mode = #tpu.pipeline_mode<synchronous>, transform_indices = @transform_6, window_bounds = array<i64: 1, 32>}, {pipeline_mode = #tpu.pipeline_mode<synchronous>, transform_indices = @transform_7, window_bounds = array<i64: 32, 4>}, {pipeline_mode = #tpu.pipeline_mode<synchronous>, transform_indices = @transform_8, window_bounds = array<i64: 1, 4>}, {pipeline_mode = #tpu.pipeline_mode<synchronous>, transform_indices = @transform_9, window_bounds = array<i64: 8, 4>}]} {
    %c16_i32 = arith.constant 16 : i32
    %0 = arith.muli %arg1, %c16_i32 : i32
    %1 = tpu.assume_multiple %0, 8 : i32
    %c0_i32 = arith.constant 0 : i32
    %2 = arith.cmpi eq, %arg0, %c0_i32 : i32
    %3 = arith.extui %2 : i1 to i32
    %c0_i32_0 = arith.constant 0 : i32
    %4 = arith.cmpi ne, %3, %c0_i32_0 : i32
    scf.if %4 {
      %c0_i32_2 = arith.constant 0 : i32
      %8 = arith.cmpi eq, %arg1, %c0_i32_2 : i32
      %9 = arith.extui %8 : i1 to i32
      %c0_i32_3 = arith.constant 0 : i32
      %10 = arith.cmpi ne, %9, %c0_i32_3 : i32
      scf.if %10 {
        %c0_11 = arith.constant 0 : index
        %c0_12 = arith.constant 0 : index
        %21 = vector.load %arg4[%c0_11, %c0_12] : memref<16x8xf32, #tpu.memory_space<vmem>>, vector<16x8xf32>
        %c0_13 = arith.constant 0 : index
        %c0_14 = arith.constant 0 : index
        %22 = vector.load %arg5[%c0_13, %c0_14] : memref<8x16xf32, #tpu.memory_space<vmem>>, vector<8x16xf32>
        %cst_15 = arith.constant dense<0.000000e+00> : vector<16x16xf32>
        %23 = tpu.matmul %21, %22, %cst_15 {dimension_numbers = #tpu.dot_dimension_numbers<[1], [0], [0], [1], [0, 0, 1, 1], [], []>} : vector<16x8xf32>, vector<8x16xf32>, vector<16x16xf32> -> vector<16x16xf32>
        %24 = arith.truncf %23 : vector<16x16xf32> to vector<16x16xbf16>
        %c0_16 = arith.constant 0 : index
        %c0_17 = arith.constant 0 : index
        %25 = vector.load %arg12[%c0_16, %c0_17] : memref<16x16xbf16, #tpu.memory_space<vmem>>, vector<16x16xbf16>
        tpu.vector_store %arg12[%c0_16, %c0_17], %24 {strides = array<i32>} : memref<16x16xbf16, #tpu.memory_space<vmem>>, vector<16x16xbf16>,
      } else {
      }
      %c0 = arith.constant 0 : index
      %c0_4 = arith.constant 0 : index
      %11 = vector.load %arg2[%c0, %c0_4] : memref<16x16xbf16, #tpu.memory_space<vmem>>, vector<16x16xbf16>
      %c0_5 = arith.constant 0 : index
      %c0_6 = arith.constant 0 : index
      %12 = vector.load %arg12[%c0_5, %c0_6] : memref<16x16xbf16, #tpu.memory_space<vmem>>, vector<16x16xbf16>
      %cst = arith.constant dense<0.000000e+00> : vector<16x16xf32>
      %13 = tpu.matmul %11, %12, %cst {dimension_numbers = #tpu.dot_dimension_numbers<[1], [0], [0], [1], [0, 0, 1, 1], [], []>} : vector<16x16xbf16>, vector<16x16xbf16>, vector<16x16xf32> -> vector<16x16xf32>
      %c0_7 = arith.constant 0 : index
      %c0_8 = arith.constant 0 : index
      %14 = vector.load %arg6[%c0_7, %c0_8] : memref<1x16xf32, #tpu.memory_space<vmem>>, vector<1x16xf32>
      %15 = vector.broadcast %14 : vector<1x16xf32> to vector<16x16xf32>
      %16 = arith.addf %13, %15 : vector<16x16xf32>
      %cst_9 = arith.constant 0.000000e+00 : f32
      %17 = vector.broadcast %cst_9 : f32 to vector<16x16xf32>
      %18 = arith.maximumf %16, %17 : vector<16x16xf32>
      %19 = arith.index_cast %1 : i32 to index
      %c0_10 = arith.constant 0 : index
      %20 = vector.load %arg14[%19, %c0_10] : memref<16x16xf32, #tpu.memory_space<vmem>>, vector<16x16xf32>
      tpu.vector_store %arg14[%19, %c0_10], %18 {strides = array<i32>} : memref<16x16xf32, #tpu.memory_space<vmem>>, vector<16x16xf32>,
    } else {
    }
    %c1_i32 = arith.constant 1 : i32
    %5 = arith.cmpi eq, %arg0, %c1_i32 : i32
    %6 = arith.extui %5 : i1 to i32
    %c0_i32_1 = arith.constant 0 : i32
    %7 = arith.cmpi ne, %6, %c0_i32_1 : i32
    scf.if %7 {
      %c0_i32_2 = arith.constant 0 : i32
      %8 = arith.cmpi eq, %arg1, %c0_i32_2 : i32
      %9 = arith.extui %8 : i1 to i32
      %c0_i32_3 = arith.constant 0 : i32
      %10 = arith.cmpi ne, %9, %c0_i32_3 : i32
      scf.if %10 {
        %c0_19 = arith.constant 0 : index
        %c0_20 = arith.constant 0 : index
        %27 = vector.load %arg14[%c0_19, %c0_20] : memref<16x16xf32, #tpu.memory_space<vmem>>, vector<16x16xf32>
        %c0_21 = arith.constant 0 : index
        %c0_22 = arith.constant 0 : index
        %28 = vector.load %arg7[%c0_21, %c0_22] : memref<16x32xf32, #tpu.memory_space<vmem>>, vector<16x32xf32>
        %cst_23 = arith.constant dense<0.000000e+00> : vector<16x32xf32>
        %29 = tpu.matmul %27, %28, %cst_23 {dimension_numbers = #tpu.dot_dimension_numbers<[1], [0], [0], [1], [0, 0, 1, 1], [], []>} : vector<16x16xf32>, vector<16x32xf32>, vector<16x32xf32> -> vector<16x32xf32>
        %30 = arith.truncf %29 : vector<16x32xf32> to vector<16x32xbf16>
        %c0_24 = arith.constant 0 : index
        %c0_25 = arith.constant 0 : index
        %31 = vector.load %arg13[%c0_24, %c0_25] : memref<16x32xbf16, #tpu.memory_space<vmem>>, vector<16x32xbf16>
        tpu.vector_store %arg13[%c0_24, %c0_25], %30 {strides = array<i32>} : memref<16x32xbf16, #tpu.memory_space<vmem>>, vector<16x32xbf16>,
        %cst_26 = arith.constant 0.000000e+00 : f32
        %32 = vector.broadcast %cst_26 : f32 to vector<8x32xf32>
        %c0_27 = arith.constant 0 : index
        %c0_28 = arith.constant 0 : index
        %33 = vector.load %arg15[%c0_27, %c0_28] : memref<8x32xf32, #tpu.memory_space<vmem>>, vector<8x32xf32>
        tpu.vector_store %arg15[%c0_27, %c0_28], %32 {strides = array<i32>} : memref<8x32xf32, #tpu.memory_space<vmem>>, vector<8x32xf32>,
      } else {
      }
      %c0 = arith.constant 0 : index
      %c0_4 = arith.constant 0 : index
      %11 = vector.load %arg2[%c0, %c0_4] : memref<16x16xbf16, #tpu.memory_space<vmem>>, vector<16x16xbf16>
      %c0_5 = arith.constant 0 : index
      %c0_6 = arith.constant 0 : index
      %12 = vector.load %arg13[%c0_5, %c0_6] : memref<16x32xbf16, #tpu.memory_space<vmem>>, vector<16x32xbf16>
      %cst = arith.constant dense<0.000000e+00> : vector<16x32xf32>
      %13 = tpu.matmul %11, %12, %cst {dimension_numbers = #tpu.dot_dimension_numbers<[1], [0], [0], [1], [0, 0, 1, 1], [], []>} : vector<16x16xbf16>, vector<16x32xbf16>, vector<16x32xf32> -> vector<16x32xf32>
      %c0_7 = arith.constant 0 : index
      %c0_8 = arith.constant 0 : index
      %14 = vector.load %arg8[%c0_7, %c0_8] : memref<1x32xf32, #tpu.memory_space<vmem>>, vector<1x32xf32>
      %15 = vector.broadcast %14 : vector<1x32xf32> to vector<16x32xf32>
      %16 = arith.addf %13, %15 : vector<16x32xf32>
      %cst_9 = arith.constant 0.000000e+00 : f32
      %17 = vector.broadcast %cst_9 : f32 to vector<16x32xf32>
      %18 = arith.maximumf %16, %17 : vector<16x32xf32>
      %c0_10 = arith.constant 0 : index
      %c0_11 = arith.constant 0 : index
      %19 = vector.load %arg15[%c0_10, %c0_11] : memref<8x32xf32, #tpu.memory_space<vmem>>, vector<8x32xf32>
      %c0_12 = arith.constant 0 : index
      %c0_13 = arith.constant 0 : index
      %20 = vector.load %arg3[%c0_12, %c0_13] : memref<8x16xf32, #tpu.memory_space<vmem>>, vector<8x16xf32>
      %cst_14 = arith.constant dense<0.000000e+00> : vector<8x32xf32>
      %21 = tpu.matmul %20, %18, %cst_14 {dimension_numbers = #tpu.dot_dimension_numbers<[1], [0], [0], [1], [0, 0, 1, 1], [], []>} : vector<8x16xf32>, vector<16x32xf32>, vector<8x32xf32> -> vector<8x32xf32>
      %22 = arith.addf %19, %21 : vector<8x32xf32>
      %c0_15 = arith.constant 0 : index
      %c0_16 = arith.constant 0 : index
      %23 = vector.load %arg15[%c0_15, %c0_16] : memref<8x32xf32, #tpu.memory_space<vmem>>, vector<8x32xf32>
      tpu.vector_store %arg15[%c0_15, %c0_16], %22 {strides = array<i32>} : memref<8x32xf32, #tpu.memory_space<vmem>>, vector<8x32xf32>,
      %c0_i32_17 = arith.constant 0 : i32
      %24 = arith.cmpi eq, %arg1, %c0_i32_17 : i32
      %25 = arith.extui %24 : i1 to i32
      %c0_i32_18 = arith.constant 0 : i32
      %26 = arith.cmpi ne, %25, %c0_i32_18 : i32
      scf.if %26 {
        %c0_19 = arith.constant 0 : index
        %c0_20 = arith.constant 0 : index
        %27 = vector.load %arg15[%c0_19, %c0_20] : memref<8x32xf32, #tpu.memory_space<vmem>>, vector<8x32xf32>
        %c0_21 = arith.constant 0 : index
        %c0_22 = arith.constant 0 : index
        %28 = vector.load %arg9[%c0_21, %c0_22] : memref<32x4xf32, #tpu.memory_space<vmem>>, vector<32x4xf32>
        %cst_23 = arith.constant dense<0.000000e+00> : vector<8x4xf32>
        %29 = tpu.matmul %27, %28, %cst_23 {dimension_numbers = #tpu.dot_dimension_numbers<[1], [0], [0], [1], [0, 0, 1, 1], [], []>} : vector<8x32xf32>, vector<32x4xf32>, vector<8x4xf32> -> vector<8x4xf32>
        %c0_24 = arith.constant 0 : index
        %c0_25 = arith.constant 0 : index
        %30 = vector.load %arg10[%c0_24, %c0_25] : memref<1x4xf32, #tpu.memory_space<vmem>>, vector<1x4xf32>
        %31 = vector.broadcast %30 : vector<1x4xf32> to vector<8x4xf32>
        %32 = arith.addf %29, %31 : vector<8x4xf32>
        %c0_26 = arith.constant 0 : index
        %c0_27 = arith.constant 0 : index
        %33 = vector.load %arg11[%c0_26, %c0_27] : memref<8x4xf32, #tpu.memory_space<vmem>>, vector<8x4xf32>
        tpu.vector_store %arg11[%c0_26, %c0_27], %32 {strides = array<i32>} : memref<8x4xf32, #tpu.memory_space<vmem>>, vector<8x4xf32>,
      } else {
      }
    } else {
    }
    return
  }
  func.func @transform_0(%arg0: i32, %arg1: i32) -> (i32, i32) {
    %c0_i32 = arith.constant 0 : i32
    %c0_i32_0 = arith.constant 0 : i32
    return %arg1, %c0_i32 : i32, i32
  }
  func.func @transform_1(%arg0: i32, %arg1: i32) -> (i32, i32) {
    %c0_i32 = arith.constant 0 : i32
    %c0_i32_0 = arith.constant 0 : i32
    return %c0_i32, %arg1 : i32, i32
  }
  func.func @transform_2(%arg0: i32, %arg1: i32) -> (i32, i32) {
    %c0_i32 = arith.constant 0 : i32
    %c0_i32_0 = arith.constant 0 : i32
    %c0_i32_1 = arith.constant 0 : i32
    return %c0_i32, %c0_i32_0 : i32, i32
  }
  func.func @transform_3(%arg0: i32, %arg1: i32) -> (i32, i32) {
    %c0_i32 = arith.constant 0 : i32
    %c0_i32_0 = arith.constant 0 : i32
    %c0_i32_1 = arith.constant 0 : i32
    return %c0_i32, %c0_i32_0 : i32, i32
  }
  func.func @transform_4(%arg0: i32, %arg1: i32) -> (i32, i32) {
    %c0_i32 = arith.constant 0 : i32
    %c0_i32_0 = arith.constant 0 : i32
    %c0_i32_1 = arith.constant 0 : i32
    return %c0_i32, %c0_i32_0 : i32, i32
  }
  func.func @transform_5(%arg0: i32, %arg1: i32) -> (i32, i32) {
    %c0_i32 = arith.constant 0 : i32
    %c0_i32_0 = arith.constant 0 : i32
    %c0_i32_1 = arith.constant 0 : i32
    return %c0_i32, %c0_i32_0 : i32, i32
  }
  func.func @transform_6(%arg0: i32, %arg1: i32) -> (i32, i32) {
    %c0_i32 = arith.constant 0 : i32
    %c0_i32_0 = arith.constant 0 : i32
    %c0_i32_1 = arith.constant 0 : i32
    return %c0_i32, %c0_i32_0 : i32, i32
  }
  func.func @transform_7(%arg0: i32, %arg1: i32) -> (i32, i32) {
    %c0_i32 = arith.constant 0 : i32
    %c0_i32_0 = arith.constant 0 : i32
    %c0_i32_1 = arith.constant 0 : i32
    return %c0_i32, %c0_i32_0 : i32, i32
  }
  func.func @transform_8(%arg0: i32, %arg1: i32) -> (i32, i32) {
    %c0_i32 = arith.constant 0 : i32
    %c0_i32_0 = arith.constant 0 : i32
    %c0_i32_1 = arith.constant 0 : i32
    return %c0_i32, %c0_i32_0 : i32, i32
  }
  func.func @transform_9(%arg0: i32, %arg1: i32) -> (i32, i32) {
    %c0_i32 = arith.constant 0 : i32
    %c0_i32_0 = arith.constant 0 : i32
    %c0_i32_1 = arith.constant 0 : i32
    return %c0_i32, %c0_i32_0 : i32, i32
  }
}

</mosaic_0001>

<llo_original>
// kernel: graph_conv_model_forward.1
$region0: #{graph_conv_model_forward.1}
  #allocation0 [shape = 'u32[]', space=smem, size = 0x4, offset = 0x4, fixed_abs, tag = 'smem constant byte address 0x4 - core index']
  #allocation1 [shape = 'u32[72,128]{1,0:T(1,128)}', space=vmem, size = 0x9000, scoped, tag = 'internal scratch']
  #allocation2 [shape = 'bf16[16,16]{1,0:T(8,128)(2,1)}', space=vmem, size = 0x1000, scoped, tag = 'scratch operand']
  #allocation3 [shape = 'bf16[16,32]{1,0:T(8,128)(2,1)}', space=vmem, size = 0x1000, scoped, tag = 'scratch operand']
  #allocation4 [shape = 'f32[16,16]{1,0:T(8,128)}', space=vmem, size = 0x2000, scoped, tag = 'scratch operand']
  #allocation5 [shape = 'f32[8,32]{1,0:T(8,128)}', space=vmem, size = 0x1000, scoped, tag = 'scratch operand']
  %s0 = inlined_call_operand.vmem [shape: bf16[16,16], index: 0, kind: input, shape index: {}]
  %s1 = inlined_call_operand.vmem [shape: f32[8,16], index: 1, kind: input, shape index: {}]
  %s2 = inlined_call_operand.vmem [shape: f32[16,8], index: 2, kind: input, shape index: {}]
  %s3 = inlined_call_operand.vmem [shape: f32[8,16], index: 3, kind: input, shape index: {}]
  %s4 = inlined_call_operand.vmem [shape: f32[1,16], index: 4, kind: input, shape index: {}]
  %s5 = inlined_call_operand.vmem [shape: f32[16,32], index: 5, kind: input, shape index: {}]
  %s6 = inlined_call_operand.vmem [shape: f32[1,32], index: 6, kind: input, shape index: {}]
  %s7 = inlined_call_operand.vmem [shape: f32[32,4], index: 7, kind: input, shape index: {}]
  %s8 = inlined_call_operand.vmem [shape: f32[1,4], index: 8, kind: input, shape index: {}]
  %s9 = inlined_call_operand.vmem [shape: f32[8,4], index: 9, kind: output, shape index: {}]
  %s10 = sld [smem:[#allocation0]]
  $region89: #{graph_conv_model_forward.1} parent=0
    _
  %s12 = ssub.s32 1, %s10
  %s13 = scalar_select 0, %s12, %s10
  loop: start=0, step=1, limit=4
  $region2: #{graph_conv_model_forward.1} parent=0 // loop_pre_header
    _
  $region3: #{graph_conv_model_forward.1} parent=0 // loop_header
    %s15 = sphi 0, %s19
    %p16 = scmp.ge.s32.totalorder %s15, 4
    %s22 = sphi 0, %s34
    %s23 = sphi 0, %s30
    %s24 = sphi 0, %s22
    %s25 = sphi 0, %s23
    %s26 = sphi 0, %s24
    %s27 = sphi 0, %s25
    %s37 = sphi 0, %s39
    %s40 = sphi 0, %s37
    %s41 = sphi 0, %s40
    %s57 = sphi 0, %s41
    %s63 = sphi 0, %s65
    %s66 = sphi 0, %s63
    %s67 = sphi 0, %s66
    %s83 = sphi 0, %s67
    %s87 = sphi 0, %s87
    %s89 = sphi 0, %s87
    %s90 = sphi 0, %s89
    %s104 = sphi 0, %s90
    %s108 = sphi 0, %s108
    %s110 = sphi 0, %s108
    %s111 = sphi 0, %s110
    %s125 = sphi 0, %s111
    %s129 = sphi 0, %s129
    %s131 = sphi 0, %s129
    %s132 = sphi 0, %s131
    %s146 = sphi 0, %s132
    %s150 = sphi 0, %s150
    %s152 = sphi 0, %s150
    %s153 = sphi 0, %s152
    %s167 = sphi 0, %s153
    %s171 = sphi 0, %s171
    %s173 = sphi 0, %s171
    %s174 = sphi 0, %s173
    %s188 = sphi 0, %s174
    %s192 = sphi 0, %s192
    %s194 = sphi 0, %s192
    %s195 = sphi 0, %s194
    %s209 = sphi 0, %s195
    %s213 = sphi 0, %s213
    %s215 = sphi 0, %s213
    %s216 = sphi 0, %s215
    %s230 = sphi 0, %s216
    %s234 = sphi 0, %s234
    %s236 = sphi 0, %s234
    %s237 = sphi 0, %s236
    %s251 = sphi 0, %s237
  $region4: #{graph_conv_model_forward.1} parent=0 // loop_header_branch
    %18 = sbr.rel (%p16) target = $region8
  $region5: #{graph_conv_model_forward.1} parent=0 // loop_body
    %s20 = ssub.s32 %s15, 1
    %s21 = ssub.s32 %s15, 2
    %s28 = sadd.s32 1, %s23
    %p29 = scmp.ge.s32.totalorder %s28, 1
    %s30 = scalar_select %p29, 0, %s28
    %s31 = sadd.s32 1, %s22
    %s32 = scalar_select %p29, %s31, %s22
    %p33 = scmp.ge.s32.totalorder %s32, 2
    %s34 = scalar_select %p33, 0, %s32
    %s35 = ssub.s32 %s23, %s30
    %p36 = scmp.eq.s32.totalorder %s35, 0
    %s38 = sadd.s32 %s37, 1
    %s39 = scalar_select %p36, %s37, %s38
    %p42 = pneg %p36
    %p43 = scmp.eq.s32.totalorder %s15, 1
    %p44 = por %p42, %p43
    %p45 = scmp.ne.s32.totalorder %s37, %s40
    %p46 = scmp.eq.s32.totalorder %s15, 0
    %p47 = por %p45, %p46
    %p48 = scmp.ne.s32.totalorder %s37, %s40
    %p49 = scmp.eq.s32.totalorder %s20, 1
    %p50 = por %p48, %p49
    %p51 = scmp.ne.s32.totalorder %s40, %s41
    %p52 = scmp.eq.s32.totalorder %s20, 0
    %p53 = por %p51, %p52
    %p54 = scmp.ne.s32.totalorder %s40, %s41
    %p55 = scmp.eq.s32.totalorder %s21, 1
    %p56 = por %p54, %p55
    %p58 = scmp.ne.s32.totalorder %s41, %s57
    %p59 = scmp.eq.s32.totalorder %s21, 0
    %p60 = por %p58, %p59
    %s61 = ssub.s32 %s23, %s30
    %p62 = scmp.eq.s32.totalorder %s61, 0
    %s64 = sadd.s32 %s63, 1
    %s65 = scalar_select %p62, %s63, %s64
    %p68 = pneg %p62
    %p69 = scmp.eq.s32.totalorder %s15, 1
    %p70 = por %p68, %p69
    %p71 = scmp.ne.s32.totalorder %s63, %s66
    %p72 = scmp.eq.s32.totalorder %s15, 0
    %p73 = por %p71, %p72
    %p74 = scmp.ne.s32.totalorder %s63, %s66
    %p75 = scmp.eq.s32.totalorder %s20, 1
    %p76 = por %p74, %p75
    %p77 = scmp.ne.s32.totalorder %s66, %s67
    %p78 = scmp.eq.s32.totalorder %s20, 0
    %p79 = por %p77, %p78
    %p80 = scmp.ne.s32.totalorder %s66, %s67
    %p81 = scmp.eq.s32.totalorder %s21, 1
    %p82 = por %p80, %p81
    %p84 = scmp.ne.s32.totalorder %s67, %s83
    %p85 = scmp.eq.s32.totalorder %s21, 0
    %p86 = por %p84, %p85
    %s88 = sadd.s32 %s87, 1
    %p91 = scmp.eq.s32.totalorder %s15, 1
    %p92 = scmp.ne.s32.totalorder %s87, %s89
    %p93 = scmp.eq.s32.totalorder %s15, 0
    %p94 = por %p92, %p93
    %p95 = scmp.ne.s32.totalorder %s87, %s89
    %p96 = scmp.eq.s32.totalorder %s20, 1
    %p97 = por %p95, %p96
    %p98 = scmp.ne.s32.totalorder %s89, %s90
    %p99 = scmp.eq.s32.totalorder %s20, 0
    %p100 = por %p98, %p99
    %p101 = scmp.ne.s32.totalorder %s89, %s90
    %p102 = scmp.eq.s32.totalorder %s21, 1
    %p103 = por %p101, %p102
    %p105 = scmp.ne.s32.totalorder %s90, %s104
    %p106 = scmp.eq.s32.totalorder %s21, 0
    %p107 = por %p105, %p106
    %s109 = sadd.s32 %s108, 1
    %p112 = scmp.eq.s32.totalorder %s15, 1
    %p113 = scmp.ne.s32.totalorder %s108, %s110
    %p114 = scmp.eq.s32.totalorder %s15, 0
    %p115 = por %p113, %p114
    %p116 = scmp.ne.s32.totalorder %s108, %s110
    %p117 = scmp.eq.s32.totalorder %s20, 1
    %p118 = por %p116, %p117
    %p119 = scmp.ne.s32.totalorder %s110, %s111
    %p120 = scmp.eq.s32.totalorder %s20, 0
    %p121 = por %p119, %p120
    %p122 = scmp.ne.s32.totalorder %s110, %s111
    %p123 = scmp.eq.s32.totalorder %s21, 1
    %p124 = por %p122, %p123
    %p126 = scmp.ne.s32.totalorder %s111, %s125
    %p127 = scmp.eq.s32.totalorder %s21, 0
    %p128 = por %p126, %p127
    %s130 = sadd.s32 %s129, 1
    %p133 = scmp.eq.s32.totalorder %s15, 1
    %p134 = scmp.ne.s32.totalorder %s129, %s131
    %p135 = scmp.eq.s32.totalorder %s15, 0
    %p136 = por %p134, %p135
    %p137 = scmp.ne.s32.totalorder %s129, %s131
    %p138 = scmp.eq.s32.totalorder %s20, 1
    %p139 = por %p137, %p138
    %p140 = scmp.ne.s32.totalorder %s131, %s132
    %p141 = scmp.eq.s32.totalorder %s20, 0
    %p142 = por %p140, %p141
    %p143 = scmp.ne.s32.totalorder %s131, %s132
    %p144 = scmp.eq.s32.totalorder %s21, 1
    %p145 = por %p143, %p144
    %p147 = scmp.ne.s32.totalorder %s132, %s146
    %p148 = scmp.eq.s32.totalorder %s21, 0
    %p149 = por %p147, %p148
    %s151 = sadd.s32 %s150, 1
    %p154 = scmp.eq.s32.totalorder %s15, 1
    %p155 = scmp.ne.s32.totalorder %s150, %s152
    %p156 = scmp.eq.s32.totalorder %s15, 0
    %p157 = por %p155, %p156
    %p158 = scmp.ne.s32.totalorder %s150, %s152
    %p159 = scmp.eq.s32.totalorder %s20, 1
    %p160 = por %p158, %p159
    %p161 = scmp.ne.s32.totalorder %s152, %s153
    %p162 = scmp.eq.s32.totalorder %s20, 0
    %p163 = por %p161, %p162
    %p164 = scmp.ne.s32.totalorder %s152, %s153
    %p165 = scmp.eq.s32.totalorder %s21, 1
    %p166 = por %p164, %p165
    %p168 = scmp.ne.s32.totalorder %s153, %s167
    %p169 = scmp.eq.s32.totalorder %s21, 0
    %p170 = por %p168, %p169
    %s172 = sadd.s32 %s171, 1
    %p175 = scmp.eq.s32.totalorder %s15, 1
    %p176 = scmp.ne.s32.totalorder %s171, %s173
    %p177 = scmp.eq.s32.totalorder %s15, 0
    %p178 = por %p176, %p177
    %p179 = scmp.ne.s32.totalorder %s171, %s173
    %p180 = scmp.eq.s32.totalorder %s20, 1
    %p181 = por %p179, %p180
    %p182 = scmp.ne.s32.totalorder %s173, %s174
    %p183 = scmp.eq.s32.totalorder %s20, 0
    %p184 = por %p182, %p183
    %p185 = scmp.ne.s32.totalorder %s173, %s174
    %p186 = scmp.eq.s32.totalorder %s21, 1
    %p187 = por %p185, %p186
    %p189 = scmp.ne.s32.totalorder %s174, %s188
    %p190 = scmp.eq.s32.totalorder %s21, 0
    %p191 = por %p189, %p190
    %s193 = sadd.s32 %s192, 1
    %p196 = scmp.eq.s32.totalorder %s15, 1
    %p197 = scmp.ne.s32.totalorder %s192, %s194
    %p198 = scmp.eq.s32.totalorder %s15, 0
    %p199 = por %p197, %p198
    %p200 = scmp.ne.s32.totalorder %s192, %s194
    %p201 = scmp.eq.s32.totalorder %s20, 1
    %p202 = por %p200, %p201
    %p203 = scmp.ne.s32.totalorder %s194, %s195
    %p204 = scmp.eq.s32.totalorder %s20, 0
    %p205 = por %p203, %p204
    %p206 = scmp.ne.s32.totalorder %s194, %s195
    %p207 = scmp.eq.s32.totalorder %s21, 1
    %p208 = por %p206, %p207
    %p210 = scmp.ne.s32.totalorder %s195, %s209
    %p211 = scmp.eq.s32.totalorder %s21, 0
    %p212 = por %p210, %p211
    %s214 = sadd.s32 %s213, 1
    %p217 = scmp.eq.s32.totalorder %s15, 1
    %p218 = scmp.ne.s32.totalorder %s213, %s215
    %p219 = scmp.eq.s32.totalorder %s15, 0
    %p220 = por %p218, %p219
    %p221 = scmp.ne.s32.totalorder %s213, %s215
    %p222 = scmp.eq.s32.totalorder %s20, 1
    %p223 = por %p221, %p222
    %p224 = scmp.ne.s32.totalorder %s215, %s216
    %p225 = scmp.eq.s32.totalorder %s20, 0
    %p226 = por %p224, %p225
    %p227 = scmp.ne.s32.totalorder %s215, %s216
    %p228 = scmp.eq.s32.totalorder %s21, 1
    %p229 = por %p227, %p228
    %p231 = scmp.ne.s32.totalorder %s216, %s230
    %p232 = scmp.eq.s32.totalorder %s21, 0
    %p233 = por %p231, %p232
    %s235 = sadd.s32 %s234, 1
    %p238 = scmp.eq.s32.totalorder %s15, 1
    %p239 = scmp.ne.s32.totalorder %s234, %s236
    %p240 = scmp.eq.s32.totalorder %s15, 0
    %p241 = por %p239, %p240
    %p242 = scmp.ne.s32.totalorder %s234, %s236
    %p243 = scmp.eq.s32.totalorder %s20, 1
    %p244 = por %p242, %p243
    %p245 = scmp.ne.s32.totalorder %s236, %s237
    %p246 = scmp.eq.s32.totalorder %s20, 0
    %p247 = por %p245, %p246
    %p248 = scmp.ne.s32.totalorder %s236, %s237
    %p249 = scmp.eq.s32.totalorder %s21, 1
    %p250 = por %p248, %p249
    %p252 = scmp.ne.s32.totalorder %s237, %s251
    %p253 = scmp.eq.s32.totalorder %s21, 0
    %p254 = por %p252, %p253
    %p255 = scmp.le.s32.totalorder 1, %s15
    %p256 = scmp.lt.s32.totalorder %s15, 3
    %p257 = pnand %p255, %p256
    %p258 = pneg %p257
    // Predicated region
    $region9: #{graph_conv_model_forward.1} parent=5 // pred_check
      _
    $region10: #{graph_conv_model_forward.1} parent=5 // pred_check_branch
      %260 = sbr.rel (%p257) target = $region12
    $region11: #{graph_conv_model_forward.1} parent=5 // pred_region
      %s261 = ssub.s32 %s15, 1
      // Predicated region
      $region13: #{graph_conv_model_forward.1} parent=11 // pred_check
        %p262 = pneg %p53
      $region14: #{graph_conv_model_forward.1} parent=11 // pred_check_branch
        %264 = sbr.rel (%p262) target = $region16
      $region15: #{graph_conv_model_forward.1} parent=11 // pred_region
        %s265 = smul.u32 2, %s25
        %p266 = scmp.lt.s32.totalorder %s265, 1
        %s267 = scalar_select %p266, %s265, 1
        %s268 = smul.addr %s267, 4
        %s269 = scalar_lea.vmem %s0, %s268
        %s270 = smul.u32 2, %s25
      $region16: #{graph_conv_model_forward.1} parent=11 // pred_fallthru
        _
      // Predicated region
      $region17: #{graph_conv_model_forward.1} parent=11 // pred_check
        %p271 = pneg %p79
      $region18: #{graph_conv_model_forward.1} parent=11 // pred_check_branch
        %273 = sbr.rel (%p271) target = $region20
      $region19: #{graph_conv_model_forward.1} parent=11 // pred_region
        %p274 = scmp.lt.s32.totalorder %s25, 0
        %s275 = scalar_select %p274, %s25, 0
        %s276 = smul.addr %s275, 8
        %s277 = scalar_lea.vmem %s1, %s276
      $region20: #{graph_conv_model_forward.1} parent=11 // pred_fallthru
        _
      // Predicated region
      $region21: #{graph_conv_model_forward.1} parent=11 // pred_check
        %p278 = pneg %p100
      $region22: #{graph_conv_model_forward.1} parent=11 // pred_check_branch
        %280 = sbr.rel (%p278) target = $region24
      $region23: #{graph_conv_model_forward.1} parent=11 // pred_region
        _
      $region24: #{graph_conv_model_forward.1} parent=11 // pred_fallthru
        _
      // Predicated region
      $region25: #{graph_conv_model_forward.1} parent=11 // pred_check
        %p281 = pneg %p121
      $region26: #{graph_conv_model_forward.1} parent=11 // pred_check_branch
        %283 = sbr.rel (%p281) target = $region28
      $region27: #{graph_conv_model_forward.1} parent=11 // pred_region
        _
      $region28: #{graph_conv_model_forward.1} parent=11 // pred_fallthru
        _
      // Predicated region
      $region29: #{graph_conv_model_forward.1} parent=11 // pred_check
        %p284 = pneg %p142
      $region30: #{graph_conv_model_forward.1} parent=11 // pred_check_branch
        %286 = sbr.rel (%p284) target = $region32
      $region31: #{graph_conv_model_forward.1} parent=11 // pred_region
        _
      $region32: #{graph_conv_model_forward.1} parent=11 // pred_fallthru
        _
      // Predicated region
      $region33: #{graph_conv_model_forward.1} parent=11 // pred_check
        %p287 = pneg %p163
      $region34: #{graph_conv_model_forward.1} parent=11 // pred_check_branch
        %289 = sbr.rel (%p287) target = $region36
      $region35: #{graph_conv_model_forward.1} parent=11 // pred_region
        _
      $region36: #{graph_conv_model_forward.1} parent=11 // pred_fallthru
        _
      // Predicated region
      $region37: #{graph_conv_model_forward.1} parent=11 // pred_check
        %p290 = pneg %p184
      $region38: #{graph_conv_model_forward.1} parent=11 // pred_check_branch
        %292 = sbr.rel (%p290) target = $region40
      $region39: #{graph_conv_model_forward.1} parent=11 // pred_region
        _
      $region40: #{graph_conv_model_forward.1} parent=11 // pred_fallthru
        _
      // Predicated region
      $region41: #{graph_conv_model_forward.1} parent=11 // pred_check
        %p293 = pneg %p205
      $region42: #{graph_conv_model_forward.1} parent=11 // pred_check_branch
        %295 = sbr.rel (%p293) target = $region44
      $region43: #{graph_conv_model_forward.1} parent=11 // pred_region
        _
      $region44: #{graph_conv_model_forward.1} parent=11 // pred_fallthru
        _
      // Predicated region
      $region45: #{graph_conv_model_forward.1} parent=11 // pred_check
        %p296 = pneg %p226
      $region46: #{graph_conv_model_forward.1} parent=11 // pred_check_branch
        %298 = sbr.rel (%p296) target = $region48
      $region47: #{graph_conv_model_forward.1} parent=11 // pred_region
        _
      $region48: #{graph_conv_model_forward.1} parent=11 // pred_fallthru
        _
    $region12: #{graph_conv_model_forward.1} parent=5 // pred_fallthru
      _
    %p299 = scmp.lt.s32.totalorder %s15, 2
    // Predicated region
    $region49: #{graph_conv_model_forward.1} parent=5 // pred_check
      %p300 = pneg %p299
    $region50: #{graph_conv_model_forward.1} parent=5 // pred_check_branch
      %302 = sbr.rel (%p300) target = $region52
    $region51: #{graph_conv_model_forward.1} parent=5 // pred_region
      _
    $region52: #{graph_conv_model_forward.1} parent=5 // pred_fallthru
      _
    %p303 = scmp.le.s32.totalorder 1, %s15
    %p304 = scmp.lt.s32.totalorder %s15, 3
    %p305 = pnand %p303, %p304
    %p306 = pneg %p305
    // Predicated region
    $region53: #{graph_conv_model_forward.1} parent=5 // pred_check
      _
    $region54: #{graph_conv_model_forward.1} parent=5 // pred_check_branch
      %308 = sbr.rel (%p305) target = $region56
    $region55: #{graph_conv_model_forward.1} parent=5 // pred_region
      %s309 = ssub.s32 %s15, 1
      %s310 = smul.u32 2, %s25
      %p311 = scmp.lt.s32.totalorder %s310, 1
      %s312 = scalar_select %p311, %s310, 1
      %s313 = smul.addr %s312, 4
      %s314 = scalar_lea.vmem %s0, %s313
      %p315 = pneg %p53
      %p316 = pneg %p50
      %p317 = scmp.lt.s32.totalorder %s25, 0
      %s318 = scalar_select %p317, %s25, 0
      %s319 = smul.addr %s318, 8
      %s320 = scalar_lea.vmem %s1, %s319
      %p321 = pneg %p79
      %p322 = pneg %p76
      %p323 = pneg %p100
      %p324 = pneg %p97
      %p325 = pneg %p121
      %p326 = pneg %p118
      %p327 = pneg %p142
      %p328 = pneg %p139
      %p329 = pneg %p163
      %p330 = pneg %p160
      %p331 = pneg %p184
      %p332 = pneg %p181
      %p333 = pneg %p205
      %p334 = pneg %p202
      %p335 = pneg %p226
      %p336 = pneg %p223
      %p337 = pneg %p247
      %p338 = pneg %p244
      %s339 = smul.u32 2, %s25
      %p340 = scmp.lt.s32.totalorder %s339, 1
      %s341 = scalar_select %p340, %s339, 1
      %s342 = smul.addr %s341, 4
      %s343 = scalar_lea.vmem %s0, %s342
      %s344 = smul.u32 2, %s25
      %p345 = scmp.lt.s32.totalorder %s25, 0
      %s346 = scalar_select %p345, %s25, 0
      %s347 = smul.addr %s346, 8
      %s348 = scalar_lea.vmem %s1, %s347
      %s350 = smul.u32 %s25, 16
      %p351 = scmp.eq.s32.totalorder %s24, 0
      // Predicated region
      $region57: #{graph_conv_model_forward.1} parent=55 // pred_check
        %p352 = pneg %p351
      $region58: #{graph_conv_model_forward.1} parent=55 // pred_check_branch
        %354 = sbr.rel (%p352) target = $region60
      $region59: #{graph_conv_model_forward.1} parent=55 // pred_region
        %p355 = scmp.eq.s32.totalorder %s25, 0
        // Predicated region
        $region61: #{graph_conv_model_forward.1} parent=59 // pred_check
          %p356 = pneg %p355
        $region62: #{graph_conv_model_forward.1} parent=59 // pred_check_branch
          %358 = sbr.rel (%p356) target = $region64
        $region63: #{graph_conv_model_forward.1} parent=59 // pred_region
          %v359 = vld [vmem:[%s2] sm:$0xff]
          %v360 = vld [vmem:[%s2 + $0x8] sm:$0xff]
          %v361 = vld [vmem:[%s3] sm:$0xff]
          %vm362 = vcmask 64512
          %v364 = vsel %vm362, %v359, 0
          %v367 = vsel %vm362, %v360, 0
          %369 = vmatpush.msra.mxu0 0.0
          %370 = vmatpush.msra.mxu0 0.0
          %371 = vmatpush.msra.mxu0 0.0
          %372 = vmatpush.msra.mxu0 0.0
          %373 = vmatpush.msra.mxu0 0.0
          %374 = vmatpush.msra.mxu0 0.0
          %375 = vmatpush.msra.mxu0 0.0
          %376 = vmatpush.msra.mxu0 0.0
          %377 = vmatpush.msra.mxu0 0.0
          %378 = vmatpush.msra.mxu0 0.0
          %379 = vmatpush.msra.mxu0 0.0
          %380 = vmatpush.msra.mxu0 0.0
          %381 = vmatpush.msra.mxu0 0.0
          %382 = vmatpush.msra.mxu0 0.0
          %383 = vmatpush.msra.mxu0 0.0
          %384 = vmatpush.msra.mxu0 %v361
          %385 = vmatmul.f32.gmra.mxu0 %v364
          %v386 = vpop.f32.mrf.mxu0
          %v387 = vadd.f32 0.0, %v386
          %388 = vmatmul.f32.gmra.mxu0 %v367
          %v389 = vpop.f32.mrf.mxu0
          %v390 = vadd.f32 0.0, %v389
          %391 = vdwg.mxu0
          %v392 = vpack.c.bf16 %v387, %v387
          %v393 = vpack.c.bf16 %v390, %v390
          %vm394 = vcmask 125952
          %395 = vst.msk [vmem:[#allocation2] sm:$0xf] %vm394, %v392
          %396 = vst.msk [vmem:[#allocation2 + $0x4] sm:$0xf] %vm394, %v393
        $region64: #{graph_conv_model_forward.1} parent=59 // pred_fallthru
          _
        %v397 = vld [vmem:[%s343] sm:$0xf]
        %v398 = vld [vmem:[%s343 + $0x4] sm:$0xf]
        %v399 = vld [vmem:[#allocation2] sm:$0xf]
        %v400 = vld [vmem:[#allocation2 + $0x4] sm:$0xf]
        %v401 = vld [vmem:[%s4] sm:$0x1]
        %v403 = vperm.slane %v401, 0
        %v407 = vunpack.c.l.b16 %v397
        %v408 = vunpack.c.l.b16 %v398
        %v409 = vpack.c.b16 %v408, %v407
        %v412 = vunpack.c.l.b16 %v399
        %v413 = vunpack.c.l.b16 %v400
        %v414 = vpack.c.b16 %v413, %v412
        %vm416 = vcmask 130048
        %v418 = vsel %vm416, %v409, 0
        %420 = vmatpush.bf16.msra.mxu0 0
        %421 = vmatpush.bf16.msra.mxu0 0
        %422 = vmatpush.bf16.msra.mxu0 0
        %423 = vmatpush.bf16.msra.mxu0 0
        %424 = vmatpush.bf16.msra.mxu0 0
        %425 = vmatpush.bf16.msra.mxu0 0
        %426 = vmatpush.bf16.msra.mxu0 0
        %427 = vmatpush.bf16.msra.mxu0 %v414
        %428 = vmatmul.bf16.gmra.mxu0 %v418
        %v429 = vpop.f32.mrf.mxu0
        %v430 = vadd.f32 %v403, %v429
        %v431 = vpop.f32.mrf.mxu0
        %v432 = vadd.f32 %v403, %v431
        %433 = vdwg.mxu0
        %v434 = vmax.f32 %v430, 0.0
        %v435 = vmax.f32 %v432, 0.0
        %s436 = scalar_lea.vmem [#allocation4], %s350
        %437 = vst.msk [vmem:[%s436] sm:$0xff] %vm416, %v434
        %438 = vst.msk [vmem:[%s436 + $0x8] sm:$0xff] %vm416, %v435
      $region60: #{graph_conv_model_forward.1} parent=55 // pred_fallthru
        _
      %p439 = scmp.eq.s32.totalorder %s24, 1
      // Predicated region
      $region65: #{graph_conv_model_forward.1} parent=55 // pred_check
        %p440 = pneg %p439
      $region66: #{graph_conv_model_forward.1} parent=55 // pred_check_branch
        %442 = sbr.rel (%p440) target = $region68
      $region67: #{graph_conv_model_forward.1} parent=55 // pred_region
        %p443 = scmp.eq.s32.totalorder %s25, 0
        // Predicated region
        $region69: #{graph_conv_model_forward.1} parent=67 // pred_check
          %p444 = pneg %p443
        $region70: #{graph_conv_model_forward.1} parent=67 // pred_check_branch
          %446 = sbr.rel (%p444) target = $region72
        $region71: #{graph_conv_model_forward.1} parent=67 // pred_region
          %v447 = vld [vmem:[#allocation4] sm:$0xff]
          %v448 = vld [vmem:[#allocation4 + $0x8] sm:$0xff]
          %v449 = vld [vmem:[%s5] sm:$0xff]
          %v450 = vld [vmem:[%s5 + $0x8] sm:$0xff]
          %vm451 = vcmask 130048
          %v453 = vsel %vm451, %v447, 0
          %v456 = vsel %vm451, %v448, 0
          %458 = vmatpush.msra.mxu0 0.0
          %459 = vmatpush.msra.mxu0 0.0
          %460 = vmatpush.msra.mxu0 0.0
          %461 = vmatpush.msra.mxu0 0.0
          %462 = vmatpush.msra.mxu0 0.0
          %463 = vmatpush.msra.mxu0 0.0
          %464 = vmatpush.msra.mxu0 0.0
          %465 = vmatpush.msra.mxu0 0.0
          %466 = vmatpush.msra.mxu0 0.0
          %467 = vmatpush.msra.mxu0 0.0
          %468 = vmatpush.msra.mxu0 0.0
          %469 = vmatpush.msra.mxu0 0.0
          %470 = vmatpush.msra.mxu0 0.0
          %471 = vmatpush.msra.mxu0 0.0
          %472 = vmatpush.msra.mxu0 %v450
          %473 = vmatpush.msra.mxu0 %v449
          %474 = vmatmul.f32.gmra.mxu0 %v453
          %v475 = vpop.f32.mrf.mxu0
          %v476 = vadd.f32 0.0, %v475
          %477 = vmatmul.f32.gmra.mxu0 %v456
          %v478 = vpop.f32.mrf.mxu0
          %v479 = vadd.f32 0.0, %v478
          %480 = vdwg.mxu0
          %v481 = vpack.c.bf16 %v476, %v476
          %v482 = vpack.c.bf16 %v479, %v479
          %vm483 = vcmask 257024
          %484 = vst.msk [vmem:[#allocation3] sm:$0xf] %vm483, %v481
          %485 = vst.msk [vmem:[#allocation3 + $0x4] sm:$0xf] %vm483, %v482
          %vm486 = vcmask 261120
          %487 = vst.msk [vmem:[#allocation5] sm:$0xff] %vm486, 0.0
        $region72: #{graph_conv_model_forward.1} parent=67 // pred_fallthru
          _
        %v488 = vld [vmem:[%s343] sm:$0xf]
        %v489 = vld [vmem:[%s343 + $0x4] sm:$0xf]
        %v490 = vld [vmem:[#allocation3] sm:$0xf]
        %v491 = vld [vmem:[#allocation3 + $0x4] sm:$0xf]
        %v492 = vld [vmem:[%s6] sm:$0x1]
        %v494 = vperm.slane %v492, 0
        %v498 = vunpack.c.l.b16 %v488
        %v499 = vunpack.c.l.b16 %v489
        %v500 = vpack.c.b16 %v499, %v498
        %v503 = vunpack.c.l.b16 %v490
        %v504 = vunpack.c.l.b16 %v491
        %v505 = vpack.c.b16 %v504, %v503
        %vm507 = vcmask 130048
        %v509 = vsel %vm507, %v500, 0
        %511 = vmatpush.bf16.msra.mxu0 0
        %512 = vmatpush.bf16.msra.mxu0 0
        %513 = vmatpush.bf16.msra.mxu0 0
        %514 = vmatpush.bf16.msra.mxu0 0
        %515 = vmatpush.bf16.msra.mxu0 0
        %516 = vmatpush.bf16.msra.mxu0 0
        %517 = vmatpush.bf16.msra.mxu0 0
        %518 = vmatpush.bf16.msra.mxu0 %v505
        %519 = vmatmul.bf16.gmra.mxu0 %v509
        %v520 = vpop.f32.mrf.mxu0
        %v521 = vadd.f32 %v494, %v520
        %v522 = vpop.f32.mrf.mxu0
        %v523 = vadd.f32 %v494, %v522
        %524 = vdwg.mxu0
        %v525 = vmax.f32 %v521, 0.0
        %v526 = vmax.f32 %v523, 0.0
        %v527 = vld [vmem:[#allocation5] sm:$0xff]
        %v528 = vld [vmem:[%s348] sm:$0xff]
        %v530 = vsel %vm507, %v528, 0
        %532 = vmatpush.msra.mxu0 0.0
        %533 = vmatpush.msra.mxu0 0.0
        %534 = vmatpush.msra.mxu0 0.0
        %535 = vmatpush.msra.mxu0 0.0
        %536 = vmatpush.msra.mxu0 0.0
        %537 = vmatpush.msra.mxu0 0.0
        %538 = vmatpush.msra.mxu0 0.0
        %539 = vmatpush.msra.mxu0 0.0
        %540 = vmatpush.msra.mxu0 0.0
        %541 = vmatpush.msra.mxu0 0.0
        %542 = vmatpush.msra.mxu0 0.0
        %543 = vmatpush.msra.mxu0 0.0
        %544 = vmatpush.msra.mxu0 0.0
        %545 = vmatpush.msra.mxu0 0.0
        %546 = vmatpush.msra.mxu0 %v526
        %547 = vmatpush.msra.mxu0 %v525
        %548 = vmatmul.f32.gmra.mxu0 %v530
        %v549 = vpop.f32.mrf.mxu0
        %v550 = vadd.f32 0.0, %v549
        %551 = vdwg.mxu0
        %v552 = vadd.f32 %v527, %v550
        %vm553 = vcmask 261120
        %554 = vst.msk [vmem:[#allocation5] sm:$0xff] %vm553, %v552
        // Predicated region
        $region73: #{graph_conv_model_forward.1} parent=67 // pred_check
          %p555 = pneg %p443
        $region74: #{graph_conv_model_forward.1} parent=67 // pred_check_branch
          %557 = sbr.rel (%p555) target = $region76
        $region75: #{graph_conv_model_forward.1} parent=67 // pred_region
          %v558 = vld [vmem:[#allocation5] sm:$0xff]
          %v559 = vld [vmem:[%s7] sm:$0xff]
          %v560 = vld [vmem:[%s7 + $0x8] sm:$0xff]
          %v561 = vld [vmem:[%s7 + $0x10] sm:$0xff]
          %v562 = vld [vmem:[%s7 + $0x18] sm:$0xff]
          %v563 = vld [vmem:[%s8] sm:$0x1]
          %v565 = vperm.slane %v563, 0
          %v568 = vsel %vm553, %v558, 0
          %570 = vmatpush.msra.mxu0 0.0
          %571 = vmatpush.msra.mxu0 0.0
          %572 = vmatpush.msra.mxu0 0.0
          %573 = vmatpush.msra.mxu0 0.0
          %574 = vmatpush.msra.mxu0 0.0
          %575 = vmatpush.msra.mxu0 0.0
          %576 = vmatpush.msra.mxu0 0.0
          %577 = vmatpush.msra.mxu0 0.0
          %578 = vmatpush.msra.mxu0 0.0
          %579 = vmatpush.msra.mxu0 0.0
          %580 = vmatpush.msra.mxu0 0.0
          %581 = vmatpush.msra.mxu0 0.0
          %582 = vmatpush.msra.mxu0 %v562
          %583 = vmatpush.msra.mxu0 %v561
          %584 = vmatpush.msra.mxu0 %v560
          %585 = vmatpush.msra.mxu0 %v559
          %586 = vmatmul.f32.gmra.mxu0 %v568
          %v587 = vpop.f32.mrf.mxu0
          %v588 = vadd.f32 %v565, %v587
          %589 = vdwg.mxu0
          %vm590 = vcmask 31744
          %591 = vst.msk [vmem:[%s9] sm:$0xff] %vm590, %v588
        $region76: #{graph_conv_model_forward.1} parent=67 // pred_fallthru
          _
      $region68: #{graph_conv_model_forward.1} parent=55 // pred_fallthru
        _
      // Predicated region
      $region77: #{graph_conv_model_forward.1} parent=55 // pred_check
        %p592 = pneg %p244
      $region78: #{graph_conv_model_forward.1} parent=55 // pred_check_branch
        %594 = sbr.rel (%p592) target = $region80
      $region79: #{graph_conv_model_forward.1} parent=55 // pred_region
        _
      $region80: #{graph_conv_model_forward.1} parent=55 // pred_fallthru
        _
      // Predicated region
      $region81: #{graph_conv_model_forward.1} parent=55 // pred_check
        %p595 = pneg %p244
      $region82: #{graph_conv_model_forward.1} parent=55 // pred_check_branch
        %597 = sbr.rel (%p595) target = $region84
      $region83: #{graph_conv_model_forward.1} parent=55 // pred_region
        _
      $region84: #{graph_conv_model_forward.1} parent=55 // pred_fallthru
        _
    $region56: #{graph_conv_model_forward.1} parent=5 // pred_fallthru
      _
    %p598 = scmp.le.s32.totalorder 2, %s15
    // Predicated region
    $region85: #{graph_conv_model_forward.1} parent=5 // pred_check
      %p599 = pneg %p598
    $region86: #{graph_conv_model_forward.1} parent=5 // pred_check_branch
      %601 = sbr.rel (%p599) target = $region88
    $region87: #{graph_conv_model_forward.1} parent=5 // pred_region
      %s602 = ssub.s32 %s15, 2
    $region88: #{graph_conv_model_forward.1} parent=5 // pred_fallthru
      _
  $region6: #{graph_conv_model_forward.1} parent=0 // loop_footer
    %s19 = sadd.s32 1, %s15
  $region7: #{graph_conv_model_forward.1} parent=0 // loop_footer_branch
    %14 = sbr.rel target = $region3
  $region8: #{graph_conv_model_forward.1} parent=0 // loop_exit
    _

</llo_original>
